<compile_context>
chip_gen: v7x
topology: tpu7x:2x2x1
jax: 0.10.0
libtpu: 0.0.40
codegen_flags: <defaults>
</compile_context>

<pallas_src>
import jax
import jax.numpy as jnp
from jax.experimental import pallas as pl
from jax.experimental.pallas import tpu as pltpu


# ---------------------------------------------------------------------------
# Standalone Scalar.forward() kernel (framework-parity path).
# ---------------------------------------------------------------------------
def _scalar_kernel(const_ref, out_ref):
    # Pure scalar-slot work: one SMEM load + one SMEM store.
    out_ref[0] = const_ref[0]


def scalar_forward(constant: jax.Array) -> jax.Array:
    """Pallas-backed Scalar.forward(): returns the constant parameter.

    Args:
      constant: float32 array of shape (1,) holding the parameter value.
    Returns:
      float32 scalar (shape ()) equal to the parameter, matching the 0-d
      tensor returned by the PyTorch module.
    """
    out = pl.pallas_call(
        _scalar_kernel,
        out_shape=jax.ShapeDtypeStruct((1,), jnp.float32),
        in_specs=[pl.BlockSpec(memory_space=pltpu.SMEM)],
        out_specs=pl.BlockSpec(memory_space=pltpu.SMEM),
        cost_estimate=pl.CostEstimate(flops=0, transcendentals=0,
                                      bytes_accessed=8),
    )(constant)
    return out.reshape(())  # back to 0-d, like torch's scalar Parameter


def scalar_forward_direct(constant: jax.Array) -> jax.Array:
    """Preferred path: Scalar.forward() == return the parameter (no kernel)."""
    return constant.reshape(())


# ---------------------------------------------------------------------------
# Recommended consumption pattern: fuse the scalar into its consumer kernel
# as a 1-D SMEM operand (no standalone launch for the scalar itself).
# ---------------------------------------------------------------------------
def _scaled_copy_kernel(const_ref, x_ref, o_ref):
    # Broadcast from the SMEM scalar inside the consumer kernel (VPU work on
    # the data tile; the scalar read stays on the scalar slots).
    o_ref[...] = x_ref[...] * const_ref[0]


def scaled_by_constant(constant: jax.Array, x: jax.Array) -> jax.Array:
    """Example consumer fusion: y = constant * x, scalar passed via SMEM."""
    return pl.pallas_call(
        _scaled_copy_kernel,
        out_shape=jax.ShapeDtypeStruct(x.shape, x.dtype),
        in_specs=[pl.BlockSpec(memory_space=pltpu.SMEM),
                  pl.BlockSpec(memory_space=pltpu.VMEM)],
        out_specs=pl.BlockSpec(memory_space=pltpu.VMEM),
    )(constant, x)


def make_scalar_params(init_value: float) -> jax.Array:
    """Deterministic parameter init, mirroring nn.Parameter(torch.tensor(v))."""
    return jnp.full((1,), init_value, dtype=jnp.float32)


if __name__ == "__main__":
    # Scalar.forward() takes no inputs; PRNGKey(0) is only used to build the
    # small example array for the fused-consumer demonstration.
    key = jax.random.PRNGKey(0)
    init_value = 0.5  # e.g. CQL alpha / log-alpha initial value
    params = make_scalar_params(init_value)

    # 1) Pallas-backed forward (framework-parity path).
    result = jax.block_until_ready(scalar_forward(params))
    assert result.shape == ()
    assert result.dtype == jnp.float32
    assert float(result) == init_value

    # 2) Kernel-free fast path (recommended production path).
    result_direct = jax.block_until_ready(scalar_forward_direct(params))
    assert result_direct.shape == ()
    assert float(result_direct) == init_value

    # 3) Fused-consumer demo: scalar consumed directly inside another kernel.
    x = jax.random.normal(key, (8, 128), dtype=jnp.float32)
    y = jax.block_until_ready(scaled_by_constant(params, x))
    assert jnp.allclose(y, x * init_value)

    print("KERNEL_OK")
</pallas_src>

<mosaic_0001>
module attributes {stable_mosaic.version = 11 : i64} {
  func.func @_scalar_kernel(%arg0: memref<1xf32, #tpu.memory_space<smem>>, %arg1: memref<1xf32, #tpu.memory_space<smem>>) attributes {dimension_semantics = [], scalar_prefetch = 0 : i64, scratch_operands = 0 : i64, tpu.core_type = #tpu.core_type<tc>} {
    %c0 = arith.constant 0 : index
    %0 = memref.load %arg0[%c0] : memref<1xf32, #tpu.memory_space<smem>>
    %c0_0 = arith.constant 0 : index
    %1 = memref.load %arg1[%c0_0] : memref<1xf32, #tpu.memory_space<smem>>
    memref.store %0, %arg1[%c0_0] : memref<1xf32, #tpu.memory_space<smem>>
    return
  }
}

</mosaic_0001>

<llo_original>
// kernel: tpu_custom_call.1
$region0: #{tpu_custom_call.1}
  #allocation0 [shape = 'u32[]', space=smem, size = 0x4, offset = 0x4, fixed_abs, tag = 'smem constant byte address 0x4 - core index']
  #allocation1 [shape = 'u32[144,128]{1,0:T(1,128)}', space=vmem, size = 0x12000, scoped, tag = 'internal scratch']
  #allocation2 [shape = 'f32[1]{0:T(128)S(6)}', space=smem, size = 0x200, scoped, tag = 'scoped memory for tpu_custom_call.1']
  %s0 = inlined_call_operand.<no memory space> [shape: f32[1], index: 0, kind: input, shape index: {}]
  %s1 = inlined_call_operand.hbm [shape: f32[1], index: 1, kind: output, shape index: {}]
  %s2 = sld [smem:[#allocation0]]
  $region14: #{tpu_custom_call.1} parent=0
    _
  %s4 = ssub.s32 1, %s2
  %s5 = scalar_select 0, %s4, %s2
  %6 = sst [smem:[#allocation2]] %s0
  $region1: #{tpu_custom_call.1} parent=0
    #allocation3 [shape = 'u8[512]{0}', space=smem, size = 0x200, scoped, tag = 'output window, operand 0, single buffered']
    #allocation4 [shape = 's32[1]{0}', space=sflag, size = 0x4, scoped, tag = 'scoped memory for tpu_custom_call.1']
    %7 = vsyncpa [#allocation4], 0
    // Predicated region
    $region2: #{tpu_custom_call.1} parent=1 // pred_check
      _
    $region3: #{tpu_custom_call.1} parent=1 // pred_check_branch
      %9 = sbr.rel (0) target = $region5
    $region4: #{tpu_custom_call.1} parent=1 // pred_region
      _
    $region5: #{tpu_custom_call.1} parent=1 // pred_fallthru
      _
    %s10 = sld [smem:[#allocation2]]
    %s11 = scalar_lea.smem [#allocation3], 0
    %12 = sst [smem:[%s11]] %s10
    // Predicated region
    $region6: #{tpu_custom_call.1} parent=1 // pred_check
      _
    $region7: #{tpu_custom_call.1} parent=1 // pred_check_branch
      %14 = sbr.rel (0) target = $region9
    $region8: #{tpu_custom_call.1} parent=1 // pred_region
      %s16 = ssub.s32 16, 16
      %17 = vsyncadd [#allocation4], %s16
      %20 = dma.smem_to_hbm [#allocation3], 16, %s1, [#allocation4]
    $region9: #{tpu_custom_call.1} parent=1 // pred_fallthru
      _
    // Predicated region
    $region10: #{tpu_custom_call.1} parent=1 // pred_check
      _
    $region11: #{tpu_custom_call.1} parent=1 // pred_check_branch
      %22 = sbr.rel (0) target = $region13
    $region12: #{tpu_custom_call.1} parent=1 // pred_region
      %23 = dma.done [#allocation4], 16
    $region13: #{tpu_custom_call.1} parent=1 // pred_fallthru
      _
    %24 = sfence
    %25 = vsyncpa [#allocation4], 1

</llo_original>
